<compile_context>
chip_gen: v7x
topology: tpu7x:2x2x1
jax: 0.10.0
libtpu: 0.0.40
codegen_flags: <defaults>
</compile_context>

<pallas_src>
import functools

import jax
import jax.numpy as jnp
from jax.experimental import pallas as pl
from jax.experimental.pallas import tpu as pltpu


def _round_up(x, m):
    return (x + m - 1) // m * m


def _proj_kernel(xp_ref, pgw_ref, pgb_ref, pg_ref):
    """phi/g projections (stacked), once per batch element, tiled over N2.
       xp_ref : (1, Cp, tn2) bf16   pooled input tile
       pgw    : (2Ep, Cp)    bf16   [phi_w; g_w]
       pgb    : (2Ep, 1)     f32    [phi_b; g_b]
       pg_ref : (1, 2Ep, tn2) bf16  [phi; g] output tile
    """
    acc = jnp.dot(pgw_ref[...], xp_ref[0],
                  preferred_element_type=jnp.float32) + pgb_ref[...]
    pg_ref[0] = acc.astype(pg_ref.dtype)


def _nonlocal_kernel(x_ref, pg_ref, tw_ref, tb_ref, ww_ref, wb_ref, o_ref,
                     *, e_dim, n2):
    """Per (batch, query-tile) non-local block.
       x_ref : (1, Cp, tq)   bf16   input tile (also the residual)
       pg_ref: (1, 2Ep, N2p) bf16   precomputed [phi; g]
       tw/tb : theta 1x1x1 conv weight (Ep, Cp) bf16 / bias (Ep, 1) f32
       ww/wb : W conv with BN folded   (Cp, Ep) bf16 / (Cp, 1) f32
       o_ref : (1, Cp, tq)   f32
    """
    x = x_ref[0]                         # (Cp, tq)   bf16
    pg = pg_ref[0]                       # (2Ep, N2p) bf16
    phi = pg[:e_dim, :]                  # (Ep, N2p)  static, tile-aligned slice
    g = pg[e_dim:, :]                    # (Ep, N2p)

    # theta projection for this query tile (bf16 MXU, f32 accumulate).
    theta = jnp.dot(tw_ref[...], x, preferred_element_type=jnp.float32)
    theta = theta + tb_ref[...]          # (Ep, tq)

    # attn[q, n] = sum_e theta[e, q] * phi[e, n]  -- contract e directly,
    # no explicit transpose.
    attn = jax.lax.dot_general(
        theta.astype(jnp.bfloat16), phi,
        dimension_numbers=(((0,), (0,)), ((), ())),
        preferred_element_type=jnp.float32)          # (tq, N2p)

    if n2 != attn.shape[-1]:
        # Mask zero-padded key columns out of the softmax (static no-op when
        # N2 is already 128-aligned).
        col = jax.lax.broadcasted_iota(jnp.int32, attn.shape, 1)
        attn = jnp.where(col < n2, attn, -1e30)

    attn = attn - jnp.max(attn, axis=-1, keepdims=True)
    e = jnp.exp(attn)                                # (tq, N2p) f32
    s = jnp.sum(e, axis=-1, keepdims=True)           # (tq, 1)

    # Deferred softmax normalization: y_un[q, e] = sum_n e[q, n] * g[e, n],
    # then scale by 1/s on the small (tq, Ep) side.
    y = jax.lax.dot_general(
        e.astype(jnp.bfloat16), g,
        dimension_numbers=(((1,), (1,)), ((), ())),
        preferred_element_type=jnp.float32)          # (tq, Ep)
    y = y * pl.reciprocal(s, approx=True)

    # W conv (BatchNorm folded) + residual: z[c, q] = sum_e w[c, e] * y[q, e].
    z = jax.lax.dot_general(
        ww_ref[...], y.astype(jnp.bfloat16),
        dimension_numbers=(((1,), (1,)), ((), ())),
        preferred_element_type=jnp.float32)          # (Cp, tq)
    z = z + wb_ref[...]
    o_ref[0] = (z + x.astype(jnp.float32)).astype(o_ref.dtype)


def nonlocal_forward(x, params, *, tq_max=512, tn2_max=512):
    """x: (B, C, T, H, W) float32.  Returns z with the same shape (float32)."""
    B, C, T, H, W = x.shape
    E = params["theta_w"].shape[0]
    assert H % 2 == 0 and W % 2 == 0

    # MaxPool3d(kernel_size=(1,2,2)) spatial sub-sampling (host-side glue).
    xp = x.reshape(B, C, T, H // 2, 2, W // 2, 2).max(axis=(4, 6))

    N1 = T * H * W
    N2 = T * (H // 2) * (W // 2)

    # Hardware-friendly padded sizes.
    Cp = _round_up(C, 8)
    Ep = _round_up(E, 16)                       # bf16 sublane tile = 16
    tq = min(tq_max, _round_up(N1, 128))        # query tile (lane-dense)
    N1p = _round_up(N1, tq)
    tn2 = min(tn2_max, _round_up(N2, 128))      # key tile for pass 1
    N2p = _round_up(N2, tn2)

    f32, bf16 = jnp.float32, jnp.bfloat16

    def pad2(a, r, c):
        return jnp.pad(a, ((0, r - a.shape[0]), (0, c - a.shape[1])))

    # Activations: flatten, pad, store bf16 (halves HBM traffic, MXU operands).
    x_flat = jnp.pad(x.reshape(B, C, N1),
                     ((0, 0), (0, Cp - C), (0, N1p - N1))).astype(bf16)
    xp_flat = jnp.pad(xp.reshape(B, C, N2),
                      ((0, 0), (0, Cp - C), (0, N2p - N2))).astype(bf16)

    # theta conv weights.
    theta_w = pad2(params["theta_w"], Ep, Cp).astype(bf16)
    theta_b = jnp.pad(params["theta_b"], (0, Ep - E)).reshape(Ep, 1).astype(f32)

    # phi / g conv weights stacked into a single operand / single matmul.
    pg_w = jnp.concatenate([pad2(params["phi_w"], Ep, Cp),
                            pad2(params["g_w"], Ep, Cp)], axis=0).astype(bf16)
    pg_b = jnp.concatenate([jnp.pad(params["phi_b"], (0, Ep - E)),
                            jnp.pad(params["g_b"], (0, Ep - E))],
                           axis=0).reshape(2 * Ep, 1).astype(f32)

    # Fold BatchNorm3d (inference mode, running stats) into the W conv.
    eps = 1e-5
    scale = params["bn_gamma"] / jnp.sqrt(params["bn_var"] + eps)
    shift = params["bn_beta"] - params["bn_mean"] * scale
    w_eff = pad2(scale[:, None] * params["w_w"], Cp, Ep).astype(bf16)
    b_eff = jnp.pad(scale * params["w_b"] + shift,
                    (0, Cp - C)).reshape(Cp, 1).astype(f32)

    # --- pass 1: phi / g computed once per batch element --------------------
    pg = pl.pallas_call(
        _proj_kernel,
        out_shape=jax.ShapeDtypeStruct((B, 2 * Ep, N2p), bf16),
        grid=(B, N2p // tn2),
        in_specs=[
            pl.BlockSpec((1, Cp, tn2), lambda b, t: (b, 0, t)),
            pl.BlockSpec((2 * Ep, Cp), lambda b, t: (0, 0)),
            pl.BlockSpec((2 * Ep, 1), lambda b, t: (0, 0)),
        ],
        out_specs=pl.BlockSpec((1, 2 * Ep, tn2), lambda b, t: (b, 0, t)),
        compiler_params=pltpu.CompilerParams(
            dimension_semantics=("parallel", "parallel")),
    )(xp_flat, pg_w, pg_b)

    # --- pass 2: attention + W conv + BN + residual, tiled over N1 ----------
    kernel = functools.partial(_nonlocal_kernel, e_dim=Ep, n2=N2)
    out = pl.pallas_call(
        kernel,
        out_shape=jax.ShapeDtypeStruct((B, Cp, N1p), f32),
        grid=(B, N1p // tq),
        in_specs=[
            pl.BlockSpec((1, Cp, tq), lambda b, q: (b, 0, q)),      # x tile
            pl.BlockSpec((1, 2 * Ep, N2p), lambda b, q: (b, 0, 0)), # [phi; g]
            pl.BlockSpec((Ep, Cp), lambda b, q: (0, 0)),            # theta_w
            pl.BlockSpec((Ep, 1), lambda b, q: (0, 0)),             # theta_b
            pl.BlockSpec((Cp, Ep), lambda b, q: (0, 0)),            # W (BN folded)
            pl.BlockSpec((Cp, 1), lambda b, q: (0, 0)),             # bias (BN folded)
        ],
        out_specs=pl.BlockSpec((1, Cp, tq), lambda b, q: (b, 0, q)),
        compiler_params=pltpu.CompilerParams(
            dimension_semantics=("parallel", "parallel"),
            # Conservative budget that is valid on v7x (64 MiB physical VMEM);
            # raise on v6e/v5e and re-derive tq/tn2 for real video resolutions.
            vmem_limit_bytes=32 * 1024 * 1024),
    )(x_flat, pg, theta_w, theta_b, w_eff, b_eff)

    return out[:, :C, :N1].reshape(B, C, T, H, W)


def nonlocal_reference(x, params):
    """Pure-JAX f32 reference of the PyTorch forward (gaussian, dim=3)."""
    B, C, T, H, W = x.shape
    xp = x.reshape(B, C, T, H // 2, 2, W // 2, 2).max(axis=(4, 6))
    x_flat = x.reshape(B, C, -1)
    xp_flat = xp.reshape(B, C, -1)

    theta = jnp.einsum("ec,bcn->ben", params["theta_w"], x_flat) + params["theta_b"][None, :, None]
    phi = jnp.einsum("ec,bcn->ben", params["phi_w"], xp_flat) + params["phi_b"][None, :, None]
    g = jnp.einsum("ec,bcn->ben", params["g_w"], xp_flat) + params["g_b"][None, :, None]

    theta_phi = jnp.einsum("ben,bem->bnm", theta, phi)
    p = jax.nn.softmax(theta_phi, axis=2)
    y = jnp.einsum("bem,bnm->ben", g, p)

    z = jnp.einsum("ce,ben->bcn", params["w_w"], y) + params["w_b"][None, :, None]
    eps = 1e-5
    scale = params["bn_gamma"] / jnp.sqrt(params["bn_var"] + eps)
    shift = params["bn_beta"] - params["bn_mean"] * scale
    z = z * scale[None, :, None] + shift[None, :, None]
    z = z + x_flat
    return z.reshape(B, C, T, H, W)


def make_params(key, in_channels, embed_dim):
    ks = jax.random.split(key, 8)
    s = 0.05
    return {
        "theta_w": s * jax.random.normal(ks[0], (embed_dim, in_channels), jnp.float32),
        "theta_b": s * jax.random.normal(ks[1], (embed_dim,), jnp.float32),
        "phi_w": s * jax.random.normal(ks[2], (embed_dim, in_channels), jnp.float32),
        "phi_b": s * jax.random.normal(ks[3], (embed_dim,), jnp.float32),
        "g_w": s * jax.random.normal(ks[4], (embed_dim, in_channels), jnp.float32),
        "g_b": s * jax.random.normal(ks[5], (embed_dim,), jnp.float32),
        "w_w": s * jax.random.normal(ks[6], (in_channels, embed_dim), jnp.float32),
        "w_b": s * jax.random.normal(ks[7], (in_channels,), jnp.float32),
        # BatchNorm3d with constant_init(1.0, 0.0) + default running stats.
        "bn_gamma": jnp.ones((in_channels,), jnp.float32),
        "bn_beta": jnp.zeros((in_channels,), jnp.float32),
        "bn_mean": jnp.zeros((in_channels,), jnp.float32),
        "bn_var": jnp.ones((in_channels,), jnp.float32),
    }


if __name__ == "__main__":
    # Small shapes consistent with NonLocalModule(dim=3): x is (B, C, T, H, W).
    B, C, T, H, W = 2, 32, 2, 8, 8
    E = C // 2  # embed_factor = 2

    key = jax.random.PRNGKey(0)
    kx, kp = jax.random.split(key)
    x = jax.random.normal(kx, (B, C, T, H, W), jnp.float32)
    params = make_params(kp, C, E)

    z = nonlocal_forward(x, params)
    z = jax.block_until_ready(z)

    z_ref = nonlocal_reference(x, params)
    assert z.shape == x.shape
    # bf16 MXU operands + approx reciprocal -> loosened tolerance vs f32 ref.
    assert jnp.allclose(z, z_ref, rtol=2e-2, atol=2e-2), (
        float(jnp.max(jnp.abs(z - z_ref))))

    print("KERNEL_OK")
</pallas_src>

<mosaic_0001>
module attributes {stable_mosaic.version = 11 : i64} {
  func.func @_proj_kernel(%arg0: i32, %arg1: i32, %arg2: memref<1x32x128xbf16, #tpu.memory_space<vmem>>, %arg3: memref<32x32xbf16, #tpu.memory_space<vmem>>, %arg4: memref<32x1xf32, #tpu.memory_space<vmem>>, %arg5: memref<1x32x128xbf16, #tpu.memory_space<vmem>>) attributes {dimension_semantics = [#tpu.dimension_semantics<parallel>, #tpu.dimension_semantics<parallel>], iteration_bounds = array<i64: 2, 1>, scalar_prefetch = 0 : i64, scratch_operands = 0 : i64, tpu.core_type = #tpu.core_type<tc>, window_params = [{transform_indices = @transform_0, window_bounds = array<i64: 1, 32, 128>}, {pipeline_mode = #tpu.pipeline_mode<synchronous>, transform_indices = @transform_1, window_bounds = array<i64: 32, 32>}, {pipeline_mode = #tpu.pipeline_mode<synchronous>, transform_indices = @transform_2, window_bounds = array<i64: 32, 1>}, {transform_indices = @transform_3, window_bounds = array<i64: 1, 32, 128>}]} {
    %c0 = arith.constant 0 : index
    %c0_0 = arith.constant 0 : index
    %0 = vector.load %arg3[%c0, %c0_0] : memref<32x32xbf16, #tpu.memory_space<vmem>>, vector<32x32xbf16>
    %c0_1 = arith.constant 0 : index
    %c0_2 = arith.constant 0 : index
    %c0_3 = arith.constant 0 : index
    %1 = vector.load %arg2[%c0_1, %c0_2, %c0_3] : memref<1x32x128xbf16, #tpu.memory_space<vmem>>, vector<1x32x128xbf16>
    %2 = vector.shape_cast %1 : vector<1x32x128xbf16> to vector<32x128xbf16>
    %cst = arith.constant dense<0.000000e+00> : vector<32x128xf32>
    %3 = tpu.matmul %0, %2, %cst {dimension_numbers = #tpu.dot_dimension_numbers<[1], [0], [0], [1], [0, 0, 1, 1], [], []>} : vector<32x32xbf16>, vector<32x128xbf16>, vector<32x128xf32> -> vector<32x128xf32>
    %c0_4 = arith.constant 0 : index
    %c0_5 = arith.constant 0 : index
    %4 = vector.load %arg4[%c0_4, %c0_5] : memref<32x1xf32, #tpu.memory_space<vmem>>, vector<32x1xf32>
    %5 = vector.broadcast %4 : vector<32x1xf32> to vector<32x128xf32>
    %6 = arith.addf %3, %5 : vector<32x128xf32>
    %7 = arith.truncf %6 : vector<32x128xf32> to vector<32x128xbf16>
    %c0_6 = arith.constant 0 : index
    %c0_7 = arith.constant 0 : index
    %c0_8 = arith.constant 0 : index
    %8 = vector.load %arg5[%c0_6, %c0_7, %c0_8] : memref<1x32x128xbf16, #tpu.memory_space<vmem>>, vector<1x32x128xbf16>
    %9 = vector.shape_cast %8 : vector<1x32x128xbf16> to vector<32x128xbf16>
    %10 = vector.shape_cast %7 : vector<32x128xbf16> to vector<1x32x128xbf16>
    tpu.vector_store %arg5[%c0_6, %c0_7, %c0_8], %10 {strides = array<i32>} : memref<1x32x128xbf16, #tpu.memory_space<vmem>>, vector<1x32x128xbf16>,
    return
  }
  func.func @transform_0(%arg0: i32, %arg1: i32) -> (i32, i32, i32) {
    %c0_i32 = arith.constant 0 : i32
    %c0_i32_0 = arith.constant 0 : i32
    return %arg0, %c0_i32, %arg1 : i32, i32, i32
  }
  func.func @transform_1(%arg0: i32, %arg1: i32) -> (i32, i32) {
    %c0_i32 = arith.constant 0 : i32
    %c0_i32_0 = arith.constant 0 : i32
    %c0_i32_1 = arith.constant 0 : i32
    return %c0_i32, %c0_i32_0 : i32, i32
  }
  func.func @transform_2(%arg0: i32, %arg1: i32) -> (i32, i32) {
    %c0_i32 = arith.constant 0 : i32
    %c0_i32_0 = arith.constant 0 : i32
    %c0_i32_1 = arith.constant 0 : i32
    return %c0_i32, %c0_i32_0 : i32, i32
  }
  func.func @transform_3(%arg0: i32, %arg1: i32) -> (i32, i32, i32) {
    %c0_i32 = arith.constant 0 : i32
    %c0_i32_0 = arith.constant 0 : i32
    return %arg0, %c0_i32, %arg1 : i32, i32, i32
  }
}

</mosaic_0001>

<llo_original>
// kernel: tpu_custom_call.1
$region0: #{tpu_custom_call.1}
  #allocation0 [shape = 'u32[]', space=smem, size = 0x4, offset = 0x4, fixed_abs, tag = 'smem constant byte address 0x4 - core index']
  #allocation1 [shape = 'u32[144,128]{1,0:T(1,128)}', space=vmem, size = 0x12000, scoped, tag = 'internal scratch']
  %s0 = inlined_call_operand.vmem [shape: bf16[2,32,128], index: 0, kind: input, shape index: {}]
  %s1 = inlined_call_operand.hbm [shape: bf16[32,32], index: 1, kind: input, shape index: {}]
  %s2 = inlined_call_operand.vmem [shape: f32[32,1], index: 2, kind: input, shape index: {}]
  %s3 = inlined_call_operand.hbm [shape: bf16[2,32,128], index: 3, kind: output, shape index: {}]
  %s4 = sld [smem:[#allocation0]]
  $region49: #{tpu_custom_call.1} parent=0
    _
  %s6 = ssub.s32 1, %s4
  %s7 = scalar_select 0, %s6, %s4
  $region1: #{tpu_custom_call.1} parent=0
    #allocation2 [shape = 'u8[8192]{0}', space=vmem, size = 0x2000, scoped, tag = 'input window, operand 1, single buffered']
    #allocation3 [shape = 's32[2]{0}', space=sflag, size = 0x8, scoped, tag = 'scoped memory for tpu_custom_call.1']
    #allocation4 [shape = 's32[2]{0}', space=sflag, size = 0x8, scoped, tag = 'scoped memory for tpu_custom_call.1']
    #allocation5 [shape = 'u8[16384]{0}', space=vmem, size = 0x4000, scoped, tag = 'output window, operand 0']
    %8 = vsyncpa [#allocation3], 0
    %9 = vsyncpa [#allocation4], 0
    %s10 = scalar_lea.sflag [#allocation4], 1
    %11 = vsyncpa %s10, 0
    loop: start=0, step=1, limit=4
    $region2: #{tpu_custom_call.1} parent=1 // loop_pre_header
      _
    $region3: #{tpu_custom_call.1} parent=1 // loop_header
      %s13 = sphi 0, %s17
      %p14 = scmp.ge.s32.totalorder %s13, 4
      %s20 = sphi 0, %s32
      %s21 = sphi 0, %s28
      %s22 = sphi 0, %s20
      %s23 = sphi 0, %s21
      %s24 = sphi 0, %s22
      %s25 = sphi 0, %s23
      %s37 = sphi 0, %s39
      %s40 = sphi 0, %s37
      %s41 = sphi 0, %s40
      %s57 = sphi 0, %s41
      %s61 = sphi 0, %s61
      %s63 = sphi 0, %s61
      %s64 = sphi 0, %s63
      %s78 = sphi 0, %s64
      %s82 = sphi 0, %s82
      %s84 = sphi 0, %s82
      %s85 = sphi 0, %s84
      %s99 = sphi 0, %s85
      %s107 = sphi 0, %s109
      %s110 = sphi 0, %s107
      %s111 = sphi 0, %s110
      %s127 = sphi 0, %s111
    $region4: #{tpu_custom_call.1} parent=1 // loop_header_branch
      %16 = sbr.rel (%p14) target = $region8
    $region5: #{tpu_custom_call.1} parent=1 // loop_body
      %s18 = ssub.s32 %s13, 1
      %s19 = ssub.s32 %s13, 2
      %s26 = sadd.s32 1, %s21
      %p27 = scmp.ge.s32.totalorder %s26, 1
      %s28 = scalar_select %p27, 0, %s26
      %s29 = sadd.s32 1, %s20
      %s30 = scalar_select %p27, %s29, %s20
      %p31 = scmp.ge.s32.totalorder %s30, 2
      %s32 = scalar_select %p31, 0, %s30
      %s33 = ssub.s32 %s20, %s32
      %s34 = ssub.s32 %s21, %s28
      %s35 = sor.u32 %s33, %s34
      %p36 = scmp.eq.s32.totalorder %s35, 0
      %s38 = sadd.s32 %s37, 1
      %s39 = scalar_select %p36, %s37, %s38
      %p42 = pneg %p36
      %p43 = scmp.eq.s32.totalorder %s13, 1
      %p44 = por %p42, %p43
      %p45 = scmp.ne.s32.totalorder %s37, %s40
      %p46 = scmp.eq.s32.totalorder %s13, 0
      %p47 = por %p45, %p46
      %p48 = scmp.ne.s32.totalorder %s37, %s40
      %p49 = scmp.eq.s32.totalorder %s18, 1
      %p50 = por %p48, %p49
      %p51 = scmp.ne.s32.totalorder %s40, %s41
      %p52 = scmp.eq.s32.totalorder %s18, 0
      %p53 = por %p51, %p52
      %p54 = scmp.ne.s32.totalorder %s40, %s41
      %p55 = scmp.eq.s32.totalorder %s19, 1
      %p56 = por %p54, %p55
      %p58 = scmp.ne.s32.totalorder %s41, %s57
      %p59 = scmp.eq.s32.totalorder %s19, 0
      %p60 = por %p58, %p59
      %s62 = sadd.s32 %s61, 1
      %p65 = scmp.eq.s32.totalorder %s13, 1
      %p66 = scmp.ne.s32.totalorder %s61, %s63
      %p67 = scmp.eq.s32.totalorder %s13, 0
      %p68 = por %p66, %p67
      %p69 = scmp.ne.s32.totalorder %s61, %s63
      %p70 = scmp.eq.s32.totalorder %s18, 1
      %p71 = por %p69, %p70
      %p72 = scmp.ne.s32.totalorder %s63, %s64
      %p73 = scmp.eq.s32.totalorder %s18, 0
      %p74 = por %p72, %p73
      %p75 = scmp.ne.s32.totalorder %s63, %s64
      %p76 = scmp.eq.s32.totalorder %s19, 1
      %p77 = por %p75, %p76
      %p79 = scmp.ne.s32.totalorder %s64, %s78
      %p80 = scmp.eq.s32.totalorder %s19, 0
      %p81 = por %p79, %p80
      %s83 = sadd.s32 %s82, 1
      %p86 = scmp.eq.s32.totalorder %s13, 1
      %p87 = scmp.ne.s32.totalorder %s82, %s84
      %p88 = scmp.eq.s32.totalorder %s13, 0
      %p89 = por %p87, %p88
      %p90 = scmp.ne.s32.totalorder %s82, %s84
      %p91 = scmp.eq.s32.totalorder %s18, 1
      %p92 = por %p90, %p91
      %p93 = scmp.ne.s32.totalorder %s84, %s85
      %p94 = scmp.eq.s32.totalorder %s18, 0
      %p95 = por %p93, %p94
      %p96 = scmp.ne.s32.totalorder %s84, %s85
      %p97 = scmp.eq.s32.totalorder %s19, 1
      %p98 = por %p96, %p97
      %p100 = scmp.ne.s32.totalorder %s85, %s99
      %p101 = scmp.eq.s32.totalorder %s19, 0
      %p102 = por %p100, %p101
      %s103 = ssub.s32 %s20, %s32
      %s104 = ssub.s32 %s21, %s28
      %s105 = sor.u32 %s103, %s104
      %p106 = scmp.eq.s32.totalorder %s105, 0
      %s108 = sadd.s32 %s107, 1
      %s109 = scalar_select %p106, %s107, %s108
      %p112 = pneg %p106
      %p113 = scmp.eq.s32.totalorder %s13, 1
      %p114 = por %p112, %p113
      %p115 = scmp.ne.s32.totalorder %s107, %s110
      %p116 = scmp.eq.s32.totalorder %s13, 0
      %p117 = por %p115, %p116
      %p118 = scmp.ne.s32.totalorder %s107, %s110
      %p119 = scmp.eq.s32.totalorder %s18, 1
      %p120 = por %p118, %p119
      %p121 = scmp.ne.s32.totalorder %s110, %s111
      %p122 = scmp.eq.s32.totalorder %s18, 0
      %p123 = por %p121, %p122
      %p124 = scmp.ne.s32.totalorder %s110, %s111
      %p125 = scmp.eq.s32.totalorder %s19, 1
      %p126 = por %p124, %p125
      %p128 = scmp.ne.s32.totalorder %s111, %s127
      %p129 = scmp.eq.s32.totalorder %s19, 0
      %p130 = por %p128, %p129
      %p131 = scmp.le.s32.totalorder 1, %s13
      %p132 = scmp.lt.s32.totalorder %s13, 3
      %p133 = pnand %p131, %p132
      %p134 = pneg %p133
      // Predicated region
      $region9: #{tpu_custom_call.1} parent=5 // pred_check
        _
      $region10: #{tpu_custom_call.1} parent=5 // pred_check_branch
        %136 = sbr.rel (%p133) target = $region12
      $region11: #{tpu_custom_call.1} parent=5 // pred_region
        %s137 = ssub.s32 %s13, 1
        // Predicated region
        $region13: #{tpu_custom_call.1} parent=11 // pred_check
          %p138 = pneg %p74
        $region14: #{tpu_custom_call.1} parent=11 // pred_check_branch
          %140 = sbr.rel (%p138) target = $region16
        $region15: #{tpu_custom_call.1} parent=11 // pred_region
          %s142 = ssub.s32 256, 256
          %143 = vsyncadd [#allocation3], %s142
          %s144 = sshll.u32 [#allocation2], 4
          %s145 = int_to_ptr.vmem [resolvable:$true] %s144
          %150 = dma.hbm_to_vmem [thread:$0]  %s1, 256, %s145, [#allocation3], 64, 64, 4
        $region16: #{tpu_custom_call.1} parent=11 // pred_fallthru
          _
        // Predicated region
        $region17: #{tpu_custom_call.1} parent=11 // pred_check
          %p151 = pneg %p95
        $region18: #{tpu_custom_call.1} parent=11 // pred_check_branch
          %153 = sbr.rel (%p151) target = $region20
        $region19: #{tpu_custom_call.1} parent=11 // pred_region
          _
        $region20: #{tpu_custom_call.1} parent=11 // pred_fallthru
          _
      $region12: #{tpu_custom_call.1} parent=5 // pred_fallthru
        _
      %p154 = scmp.lt.s32.totalorder %s13, 2
      // Predicated region
      $region21: #{tpu_custom_call.1} parent=5 // pred_check
        %p155 = pneg %p154
      $region22: #{tpu_custom_call.1} parent=5 // pred_check_branch
        %157 = sbr.rel (%p155) target = $region24
      $region23: #{tpu_custom_call.1} parent=5 // pred_region
        // Predicated region
        $region25: #{tpu_custom_call.1} parent=23 // pred_check
          %p158 = pneg %p47
        $region26: #{tpu_custom_call.1} parent=23 // pred_check_branch
          %160 = sbr.rel (%p158) target = $region28
        $region27: #{tpu_custom_call.1} parent=23 // pred_region
          %p161 = scmp.lt.s32.totalorder %s20, 1
          %s162 = scalar_select %p161, %s20, 1
          %p163 = scmp.lt.s32.totalorder %s21, 0
          %s164 = scalar_select %p163, %s21, 0
          %s165 = smul.addr %s162, 4
          %s166 = sadd.s32 %s164, %s165
          %s167 = smul.addr %s166, 4
          %s168 = scalar_lea.vmem %s0, %s167
        $region28: #{tpu_custom_call.1} parent=23 // pred_fallthru
          _
      $region24: #{tpu_custom_call.1} parent=5 // pred_fallthru
        _
      %p169 = scmp.le.s32.totalorder 1, %s13
      %p170 = scmp.lt.s32.totalorder %s13, 3
      %p171 = pnand %p169, %p170
      %p172 = pneg %p171
      // Predicated region
      $region29: #{tpu_custom_call.1} parent=5 // pred_check
        _
      $region30: #{tpu_custom_call.1} parent=5 // pred_check_branch
        %174 = sbr.rel (%p171) target = $region32
      $region31: #{tpu_custom_call.1} parent=5 // pred_region
        %s175 = ssub.s32 %s13, 1
        // Predicated region
        $region33: #{tpu_custom_call.1} parent=31 // pred_check
          %p176 = pneg %p74
        $region34: #{tpu_custom_call.1} parent=31 // pred_check_branch
          %178 = sbr.rel (%p176) target = $region36
        $region35: #{tpu_custom_call.1} parent=31 // pred_region
          %179 = dma.done [#allocation3], 256
        $region36: #{tpu_custom_call.1} parent=31 // pred_fallthru
          _
        %p180 = scmp.lt.s32.totalorder %s22, 1
        %s181 = scalar_select %p180, %s22, 1
        %p182 = scmp.lt.s32.totalorder %s23, 0
        %s183 = scalar_select %p182, %s23, 0
        %s184 = smul.addr %s181, 4
        %s185 = sadd.s32 %s183, %s184
        %s186 = smul.addr %s185, 4
        %s187 = scalar_lea.vmem %s0, %s186
        %p188 = pneg %p53
        %p189 = pneg %p50
        %p190 = pneg %p74
        %p191 = pneg %p71
        %p192 = pneg %p95
        %p193 = pneg %p92
        %p194 = pneg %p123
        %p195 = pneg %p120
        %s196 = sand.u32 %s110, 1
        %s197 = scalar_lea.sflag [#allocation4], %s196
        %s198 = sand.u32 %s110, 1
        %s199 = smul.addr %s198, 16
        %s200 = scalar_lea.vmem [#allocation5], %s199
        %p201 = scmp.lt.s32.totalorder %s22, 1
        %s202 = scalar_select %p201, %s22, 1
        %p203 = scmp.lt.s32.totalorder %s23, 0
        %s204 = scalar_select %p203, %s23, 0
        %s205 = smul.addr %s202, 4
        %s206 = sadd.s32 %s204, %s205
        %s207 = smul.addr %s206, 4
        %s208 = scalar_lea.vmem %s0, %s207
        %v210 = vld [vmem:[#allocation2] sm:$0xf]
        %v211 = vld [vmem:[#allocation2 + $0x4] sm:$0xf]
        %v212 = vld [vmem:[#allocation2 + $0x8] sm:$0xf]
        %v213 = vld [vmem:[#allocation2 + $0xc] sm:$0xf]
        %v214 = vld [vmem:[%s208] sm:$0xf]
        %v215 = vld [vmem:[%s208 + $0x4] sm:$0xf]
        %v216 = vld [vmem:[%s208 + $0x8] sm:$0xf]
        %v217 = vld [vmem:[%s208 + $0xc] sm:$0xf]
        %v218 = vld [vmem:[%s2] sm:$0xff]
        %v219 = vld [vmem:[%s2 + $0x8] sm:$0xff]
        %v220 = vld [vmem:[%s2 + $0x10] sm:$0xff]
        %v221 = vld [vmem:[%s2 + $0x18] sm:$0xff]
        %223 = vset.pattern.permute.xlu0 0
        %224 = vperm.xlu0 %223, %v218
        %v225 = vpop.permute.xlu0 %224
        %228 = vset.pattern.permute.xlu0 0
        %229 = vperm.xlu0 %228, %v219
        %v230 = vpop.permute.xlu0 %229
        %233 = vset.pattern.permute.xlu0 0
        %234 = vperm.xlu0 %233, %v220
        %v235 = vpop.permute.xlu0 %234
        %238 = vset.pattern.permute.xlu0 0
        %239 = vperm.xlu0 %238, %v221
        %v240 = vpop.permute.xlu0 %239
        %v246 = vunpack.c.l.b16 %v210
        %v247 = vunpack.c.l.b16 %v211
        %v248 = vunpack.c.l.b16 %v212
        %v249 = vunpack.c.l.b16 %v213
        %v250 = vpack.c.b16 %v247, %v246
        %v251 = vpack.c.b16 %v249, %v248
        %v256 = vunpack.c.l.b16 %v214
        %v257 = vunpack.c.l.b16 %v215
        %v258 = vunpack.c.l.b16 %v216
        %v259 = vunpack.c.l.b16 %v217
        %v260 = vpack.c.b16 %v257, %v256
        %v261 = vpack.c.b16 %v259, %v258
        %vm264 = vcmask 261120
        %v266 = vsel %vm264, %v250, 0
        %v269 = vsel %vm264, %v251, 0
        %271 = vmatprep.subr.bf16.mxu0 0
        %272 = vmatpush1.bf16.msra.mxu0 %v260
        %273 = vmatprep.subr.bf16.mxu0 0
        %274 = vmatpush1.bf16.msra.mxu0 %v261
        %275 = vmatprep.subr.bf16.mxu0 0
        %276 = vmatpush1.bf16.msra.mxu0 0
        %277 = vmatprep.subr.bf16.mxu0 0
        %278 = vmatpush1.bf16.msra.mxu0 0
        %279 = vmatprep.subr.bf16.mxu0 0
        %280 = vmatpush1.bf16.msra.mxu0 0
        %281 = vmatprep.subr.bf16.mxu0 0
        %282 = vmatpush1.bf16.msra.mxu0 0
        %283 = vmatprep.subr.bf16.mxu0 0
        %284 = vmatpush1.bf16.msra.mxu0 0
        %285 = vmatprep.subr.bf16.mxu0 0
        %286 = vmatpush1.bf16.msra.mxu0 0
        %287 = vmatprep.subr.bf16.mxu0 0
        %288 = vmatpush1.bf16.msra.mxu0 0
        %289 = vmatprep.subr.bf16.mxu0 0
        %290 = vmatpush1.bf16.msra.mxu0 0
        %291 = vmatprep.subr.bf16.mxu0 0
        %292 = vmatpush1.bf16.msra.mxu0 0
        %293 = vmatprep.subr.bf16.mxu0 0
        %294 = vmatpush1.bf16.msra.mxu0 0
        %295 = vmatprep.subr.bf16.mxu0 0
        %296 = vmatpush1.bf16.msra.mxu0 0
        %297 = vmatprep.subr.bf16.mxu0 0
        %298 = vmatpush1.bf16.msra.mxu0 0
        %299 = vmatprep.subr.bf16.mxu0 0
        %300 = vmatpush1.bf16.msra.mxu0 0
        %301 = vmatprep.subr.bf16.mxu0 0
        %302 = vmatpush1.bf16.msra.mxu0 0
        %303 = vmatprep.mubr.bf16.mxu0 0
        %304 = vmatmul.mubr.bf16.gmra.mrb[0].mxu0 %v266
        %v305 = vpop.f32.mrb[0].mxu0
        %v306 = vadd.f32 %v225, %v305
        %v307 = vpop.f32.mrb[0].mxu0
        %v308 = vpop.f32.mrb[0].mxu0
        %v309 = vadd.f32 %v230, %v308
        %v310 = vpop.f32.mrb[0].mxu0
        %311 = vmatprep.mubr.bf16.mxu0 0
        %312 = vmatmul.mubr.bf16.gmra.mrb[0].mxu0 %v269
        %v313 = vpop.f32.mrb[0].mxu0
        %v314 = vadd.f32 %v235, %v313
        %v315 = vpop.f32.mrb[0].mxu0
        %v316 = vpop.f32.mrb[0].mxu0
        %v317 = vadd.f32 %v240, %v316
        %v318 = vpop.f32.mrb[0].mxu0
        %319 = vdwg.mxu0
        %v320 = vpack.c.bf16 %v309, %v306
        %v321 = vpack.c.bf16 %v317, %v314
        %v324 = vunpack.c.l.b16 %v320
        %v325 = vunpack.c.h.b16 %v320
        %v326 = vunpack.c.l.b16 %v321
        %v327 = vunpack.c.h.b16 %v321
        %v328 = vpack.c.b16 %v324, %v324
        %v329 = vpack.c.b16 %v325, %v325
        %v330 = vpack.c.b16 %v326, %v326
        %v331 = vpack.c.b16 %v327, %v327
        %336 = vst [vmem:[%s200] sm:$0xf] %v328
        %337 = vst [vmem:[%s200 + $0x4] sm:$0xf] %v329
        %338 = vst [vmem:[%s200 + $0x8] sm:$0xf] %v330
        %339 = vst [vmem:[%s200 + $0xc] sm:$0xf] %v331
        %s340 = sand.u32 %s110, 1
        %s341 = scalar_lea.sflag [#allocation4], %s340
        %s342 = sand.u32 %s110, 1
        %s343 = smul.addr %s342, 16
        %s344 = scalar_lea.vmem [#allocation5], %s343
        // Predicated region
        $region37: #{tpu_custom_call.1} parent=31 // pred_check
          %p345 = pneg %p120
        $region38: #{tpu_custom_call.1} parent=31 // pred_check_branch
          %347 = sbr.rel (%p345) target = $region40
        $region39: #{tpu_custom_call.1} parent=31 // pred_region
          %s349 = ssub.s32 256, 256
          %350 = vsyncadd %s341, %s349
          %s351 = smul.addr %s22, 4
          %s352 = sadd.s32 %s23, %s351
          %s353 = smul.addr %s352, 64
          %s354 = scalar_lea.hbm %s3, %s353
          %s355 = sshll.u32 %s344, 4
          %s356 = int_to_ptr.vmem [resolvable:$true] %s355
          %361 = dma.vmem_to_hbm [thread:$0]  %s356, 256, %s354, %s341, 64, 64, 4
        $region40: #{tpu_custom_call.1} parent=31 // pred_fallthru
          _
      $region32: #{tpu_custom_call.1} parent=5 // pred_fallthru
        _
      %p362 = scmp.le.s32.totalorder 2, %s13
      // Predicated region
      $region41: #{tpu_custom_call.1} parent=5 // pred_check
        %p363 = pneg %p362
      $region42: #{tpu_custom_call.1} parent=5 // pred_check_branch
        %365 = sbr.rel (%p363) target = $region44
      $region43: #{tpu_custom_call.1} parent=5 // pred_region
        %s366 = ssub.s32 %s13, 2
        // Predicated region
        $region45: #{tpu_custom_call.1} parent=43 // pred_check
          %p367 = pneg %p126
        $region46: #{tpu_custom_call.1} parent=43 // pred_check_branch
          %369 = sbr.rel (%p367) target = $region48
        $region47: #{tpu_custom_call.1} parent=43 // pred_region
          %s370 = sand.u32 %s111, 1
          %s371 = scalar_lea.sflag [#allocation4], %s370
          %s372 = sand.u32 %s111, 1
          %s373 = smul.addr %s372, 16
          %s374 = scalar_lea.vmem [#allocation5], %s373
          %375 = dma.done %s371, 256
        $region48: #{tpu_custom_call.1} parent=43 // pred_fallthru
          _
      $region44: #{tpu_custom_call.1} parent=5 // pred_fallthru
        _
    $region6: #{tpu_custom_call.1} parent=1 // loop_footer
      %s17 = sadd.s32 1, %s13
    $region7: #{tpu_custom_call.1} parent=1 // loop_footer_branch
      %12 = sbr.rel target = $region3
    $region8: #{tpu_custom_call.1} parent=1 // loop_exit
      _
    %376 = vsyncpa [#allocation3], 1
    %s377 = scalar_lea.sflag [#allocation3], 1
    %378 = vsyncpa %s377, 1
    %379 = vsyncpa [#allocation4], 1
    %s380 = scalar_lea.sflag [#allocation4], 1
    %381 = vsyncpa %s380, 1

</llo_original>
